<compile_context>
chip_gen: v7x
topology: tpu7x:2x2x1
jax: 0.10.0
libtpu: 0.0.40
codegen_flags: <defaults>
</compile_context>

<pallas_src>
import numpy as np
import jax
import jax.numpy as jnp
from jax.experimental import pallas as pl
from jax.experimental.pallas import tpu as pltpu


def _round_up(x, m):
    return (x + m - 1) // m * m


def _default_vmem_limit():
    try:
        cap = int(pltpu.get_tpu_info().vmem_capacity_bytes)
    except Exception:
        cap = 128 << 20
    if cap >= (128 << 20):
        return 96 << 20                      # v5e / v6e: plenty of VMEM, cut step overhead
    return max(32 << 20, cap * 3 // 4)       # v7x: ~48 MiB of the 64 MiB


def _pick_tiles(Np, Mp, bb, cbytes, obytes, budget, tn_cap, tk_cap, want_two_col_tiles):
    """Pick (tn, tk, bb): multiples of 128 dividing Np, fitting the VMEM budget."""
    cands = [t for t in range(128, Np + 1, 128) if Np % t == 0]

    def pick(cap):
        c = [t for t in cands if t <= cap]
        return c[-1] if c else cands[0]

    tn = pick(tn_cap)
    if want_two_col_tiles and Np >= 256:
        tn = min(tn, pick(Np // 2))          # ensure >=2 column tiles (v7x 2nd TC)
    tk = pick(tk_cap)

    def fp(bb_, tn_, tk_):
        return (2 * bb_ * Mp * tk_ * cbytes      # x block (double-buffered)
                + Mp * Mp * cbytes               # S (single-buffered)
                + 2 * tk_ * tn_ * cbytes         # CT block (double-buffered)
                + 2 * bb_ * Mp * tn_ * obytes    # output block
                + bb_ * Mp * tn_ * 4)            # f32 accumulator scratch

    while fp(bb, tn, tk) > budget:
        if tn >= tk and tn > 128:
            tn = pick(tn - 1)
        elif tk > 128:
            tk = pick(tk - 1)
        elif bb > 1:
            bb = max(1, bb // 2)
        else:
            break
    return tn, tk, bb


def _idsct2_kernel(x_ref, s_ref, ct_ref, o_ref, acc_ref):
    # x_ref  : (BB, Mp, tk)   input slab tile (compute dtype)
    # s_ref  : (Mp, Mp)       S[u, p] = sin(pi*p*(u+0.5)/M)
    # ct_ref : (tk, tn)       CT[q, v] = cos(pi*q*(v+0.5)/N)
    # o_ref  : (BB, Mp, tn)   output block (resident across k)
    # acc_ref: (BB*Mp, tn)    f32 accumulator for the first matmul
    k = pl.program_id(2)
    nk = pl.num_programs(2)
    bb, mp, tk = x_ref.shape
    tn = o_ref.shape[-1]
    cdt = ct_ref.dtype

    @pl.when(k == 0)
    def _():
        acc_ref[...] = jnp.zeros_like(acc_ref)

    # idxct along the last dim, batch-flattened so the MXU sees BB*Mp rows:
    #   (BB*Mp, tk) @ (tk, tn) accumulated in f32 over the k grid axis.
    x2 = x_ref[...].reshape(bb * mp, tk)
    acc_ref[...] += jnp.dot(x2, ct_ref[...], preferred_element_type=jnp.float32)

    @pl.when(k == nk - 1)
    def _():
        s = s_ref[...]
        tmp = acc_ref[...].reshape(bb, mp, tn).astype(cdt)
        if mp < 128 and bb > 1:
            # Small-M: flatten batch into the lane dim -> one wide MXU matmul.
            wide = jnp.concatenate([tmp[b] for b in range(bb)], axis=-1)   # (mp, bb*tn)
            y = jnp.dot(s, wide, preferred_element_type=jnp.float32)
            for b in range(bb):
                o_ref[b] = y[:, b * tn:(b + 1) * tn].astype(o_ref.dtype)
        else:
            for b in range(bb):
                o_ref[b] = jnp.dot(s, tmp[b],
                                   preferred_element_type=jnp.float32).astype(o_ref.dtype)


def make_idsct2(M, N, dtype=jnp.float32, *, compute_dtype=None,
                block_b=None, col_tile=None, k_tile=None, vmem_limit_bytes=None):
    """Build an IDSCT2 callable operating on arrays of shape (..., M, N)."""
    if compute_dtype is None:
        # TODO(synk): flip the default to bfloat16 (f32 MXU accumulation) once the
        # bf16 intermediate-quantization error is validated at production grid sizes.
        compute_dtype = dtype
    compute_dtype = jnp.dtype(compute_dtype)

    # Lane-dense padding: last dim -> multiple of 128, row dim -> multiple of 8.
    Mp = _round_up(M, 8)
    Np = _round_up(N, 128)

    # Transform tables (analogue of the module's expk0/expk1 Lee-algorithm tables,
    # expanded to full transform matrices), zero-padded so padded rows/cols are inert.
    p = np.arange(Mp)[None, :]
    u = np.arange(Mp)[:, None]
    S = np.sin(np.pi * p * (u + 0.5) / M)
    S[M:, :] = 0.0
    S[:, M:] = 0.0
    q = np.arange(Np)[:, None]
    v = np.arange(Np)[None, :]
    CT = np.cos(np.pi * q * (v + 0.5) / N)
    CT[N:, :] = 0.0
    CT[:, N:] = 0.0
    S = jnp.asarray(S, compute_dtype)
    CT = jnp.asarray(CT, compute_dtype)

    if vmem_limit_bytes is None:
        vmem_limit_bytes = _default_vmem_limit()
    vmem_limit_bytes = int(vmem_limit_bytes)
    budget = vmem_limit_bytes * 85 // 100      # headroom for compiler internals
    big_vmem = vmem_limit_bytes >= (80 << 20)  # v5e/v6e vs v7x

    cbytes = compute_dtype.itemsize

    def idsct2(x):
        orig_shape = x.shape
        assert x.shape[-2] == M and x.shape[-1] == N
        x3 = x.reshape((-1, M, N))
        B = x3.shape[0]
        obytes = jnp.dtype(x.dtype).itemsize

        # Batch slabs per grid step: target >=512 MXU rows in the first matmul.
        bb = block_b if block_b is not None else max(1, -(-512 // Mp))
        bb = int(min(max(bb, 1), 16, max(B, 1)))

        # Tile caps, chip aware; force >=2 column tiles when the batch axis is 1.
        tn_cap = col_tile if col_tile is not None else min(1024 if big_vmem else 512, Np)
        tk_cap = k_tile if k_tile is not None else min(1024 if big_vmem else 512, Np)
        want_two = (bb >= B) and (Np >= 256)
        tn, tk, bb = _pick_tiles(Np, Mp, bb, cbytes, obytes, budget,
                                 tn_cap, tk_cap, want_two)

        Bp = _round_up(B, bb)
        need_pad = (Bp != B) or (Mp != M) or (Np != N)

        xp = x3
        if need_pad:
            xp = jnp.pad(xp, ((0, Bp - B), (0, Mp - M), (0, Np - N)))
        if xp.dtype != compute_dtype:
            xp = xp.astype(compute_dtype)      # cast once in the wrapper, not per tile

        grid = (Bp // bb, Np // tn, Np // tk)

        flops = 2 * Bp * Mp * Np * (Np + Mp)
        bytes_accessed = ((Np // tn) * Bp * Mp * Np * cbytes     # x (re-read per col tile)
                          + Bp * Mp * Np * obytes                # output
                          + (Bp // bb) * Np * Np * cbytes        # CT
                          + Mp * Mp * cbytes)                    # S

        out = pl.pallas_call(
            _idsct2_kernel,
            out_shape=jax.ShapeDtypeStruct((Bp, Mp, Np), x.dtype),
            grid_spec=pltpu.PrefetchScalarGridSpec(
                num_scalar_prefetch=0,
                grid=grid,
                in_specs=[
                    # x tiled along batch and contraction (k) axes.
                    pl.BlockSpec((bb, Mp, tk), lambda i, j, k: (i, 0, k)),
                    # S is constant across the whole grid: single VMEM buffer.
                    pl.BlockSpec((Mp, Mp), lambda i, j, k: (0, 0),
                                 pipeline_mode=pl.Buffered(1)),
                    # CT tiled along contraction (k) and output-column (j) axes.
                    pl.BlockSpec((tk, tn), lambda i, j, k: (k, j)),
                ],
                out_specs=pl.BlockSpec((bb, Mp, tn), lambda i, j, k: (i, 0, j)),
                scratch_shapes=[pltpu.VMEM((bb * Mp, tn), jnp.float32)],
            ),
            compiler_params=pltpu.CompilerParams(
                dimension_semantics=("parallel", "parallel", "arbitrary"),
                vmem_limit_bytes=vmem_limit_bytes),
            cost_estimate=pl.CostEstimate(
                flops=int(flops), transcendentals=0,
                bytes_accessed=int(bytes_accessed)),
        )(xp, S, CT)

        if need_pad:
            out = out[:B, :M, :N]
        return out.reshape(orig_shape)

    return idsct2


if __name__ == "__main__":
    def ref_idsct2(x, M, N):
        pp = np.arange(M)[None, :]
        uu = np.arange(M)[:, None]
        S_ref = jnp.asarray(np.sin(np.pi * pp * (uu + 0.5) / M), jnp.float32)
        qq = np.arange(N)[:, None]
        vv = np.arange(N)[None, :]
        CT_ref = jnp.asarray(np.cos(np.pi * qq * (vv + 0.5) / N), jnp.float32)
        return jnp.einsum("up,bpq,qv->buv", S_ref, x, CT_ref)

    key = jax.random.PRNGKey(0)

    # Case 1: ragged shapes (pad/slice path); f32 and bf16-operand paths.
    B, M, N = 4, 32, 64
    x = jax.random.normal(key, (B, M, N), dtype=jnp.float32)
    ref = ref_idsct2(x, M, N)

    y = jax.block_until_ready(make_idsct2(M, N)(x))
    np.testing.assert_allclose(np.asarray(y), np.asarray(ref), rtol=1e-4, atol=1e-3)

    # bf16 operands / f32 MXU accumulation; looser tolerance.
    # TODO(synk): validate bf16 tolerance at production DREAMPlace sizes before defaulting.
    y16 = jax.block_until_ready(make_idsct2(M, N, compute_dtype=jnp.bfloat16)(x))
    np.testing.assert_allclose(np.asarray(y16), np.asarray(ref), rtol=5e-2, atol=1.0)

    # Case 2: aligned shapes, multi-tile grid (exercises k-accumulation, column
    # tiling, batch slabs, and the no-pad fast path).
    B2, M2, N2 = 4, 16, 256
    x2 = jax.random.normal(jax.random.PRNGKey(1), (B2, M2, N2), dtype=jnp.float32)
    ref2 = ref_idsct2(x2, M2, N2)
    y2 = jax.block_until_ready(
        make_idsct2(M2, N2, block_b=2, col_tile=128, k_tile=128)(x2))
    np.testing.assert_allclose(np.asarray(y2), np.asarray(ref2), rtol=1e-4, atol=1e-3)

    print("KERNEL_OK")
</pallas_src>

<mosaic_0001>
module attributes {stable_mosaic.version = 11 : i64} {
  func.func @_idsct2_kernel(%arg0: i32, %arg1: i32, %arg2: i32, %arg3: memref<4x32x128xf32, #tpu.memory_space<vmem>>, %arg4: memref<32x32xf32, #tpu.memory_space<vmem>>, %arg5: memref<128x128xf32, #tpu.memory_space<vmem>>, %arg6: memref<4x32x128xf32, #tpu.memory_space<vmem>>, %arg7: memref<128x128xf32, #tpu.memory_space<vmem>>) attributes {dimension_semantics = [#tpu.dimension_semantics<parallel>, #tpu.dimension_semantics<parallel>, #tpu.dimension_semantics<arbitrary>], iteration_bounds = array<i64: 1, 1, 1>, scalar_prefetch = 0 : i64, scratch_operands = 1 : i64, tpu.core_type = #tpu.core_type<tc>, window_params = [{transform_indices = @transform_0, window_bounds = array<i64: 4, 32, 128>}, {pipeline_mode = #tpu.pipeline_mode<synchronous>, transform_indices = @transform_1, window_bounds = array<i64: 32, 32>}, {transform_indices = @transform_2, window_bounds = array<i64: 128, 128>}, {transform_indices = @transform_3, window_bounds = array<i64: 4, 32, 128>}]} {
    %c0_i32 = arith.constant 0 : i32
    %0 = arith.cmpi eq, %arg2, %c0_i32 : i32
    %1 = arith.extui %0 : i1 to i32
    %c0_i32_0 = arith.constant 0 : i32
    %2 = arith.cmpi ne, %1, %c0_i32_0 : i32
    scf.if %2 {
      %cst_11 = arith.constant 0.000000e+00 : f32
      %13 = vector.broadcast %cst_11 : f32 to vector<128x128xf32>
      %c0_12 = arith.constant 0 : index
      %c0_13 = arith.constant 0 : index
      %14 = vector.load %arg7[%c0_12, %c0_13] : memref<128x128xf32, #tpu.memory_space<vmem>>, vector<128x128xf32>
      tpu.vector_store %arg7[%c0_12, %c0_13], %13 {strides = array<i32>} : memref<128x128xf32, #tpu.memory_space<vmem>>, vector<128x128xf32>,
    } else {
    }
    %c0 = arith.constant 0 : index
    %c0_1 = arith.constant 0 : index
    %c0_2 = arith.constant 0 : index
    %3 = vector.load %arg3[%c0, %c0_1, %c0_2] : memref<4x32x128xf32, #tpu.memory_space<vmem>>, vector<4x32x128xf32>
    %4 = vector.shape_cast %3 : vector<4x32x128xf32> to vector<128x128xf32>
    %c0_3 = arith.constant 0 : index
    %c0_4 = arith.constant 0 : index
    %5 = vector.load %arg7[%c0_3, %c0_4] : memref<128x128xf32, #tpu.memory_space<vmem>>, vector<128x128xf32>
    %c0_5 = arith.constant 0 : index
    %c0_6 = arith.constant 0 : index
    %6 = vector.load %arg5[%c0_5, %c0_6] : memref<128x128xf32, #tpu.memory_space<vmem>>, vector<128x128xf32>
    %cst = arith.constant dense<0.000000e+00> : vector<128x128xf32>
    %7 = tpu.matmul %4, %6, %cst {dimension_numbers = #tpu.dot_dimension_numbers<[1], [0], [0], [1], [0, 0, 1, 1], [], []>} : vector<128x128xf32>, vector<128x128xf32>, vector<128x128xf32> -> vector<128x128xf32>
    %8 = arith.addf %5, %7 : vector<128x128xf32>
    %c0_7 = arith.constant 0 : index
    %c0_8 = arith.constant 0 : index
    %9 = vector.load %arg7[%c0_7, %c0_8] : memref<128x128xf32, #tpu.memory_space<vmem>>, vector<128x128xf32>
    tpu.vector_store %arg7[%c0_7, %c0_8], %8 {strides = array<i32>} : memref<128x128xf32, #tpu.memory_space<vmem>>, vector<128x128xf32>,
    %c0_i32_9 = arith.constant 0 : i32
    %10 = arith.cmpi eq, %arg2, %c0_i32_9 : i32
    %11 = arith.extui %10 : i1 to i32
    %c0_i32_10 = arith.constant 0 : i32
    %12 = arith.cmpi ne, %11, %c0_i32_10 : i32
    scf.if %12 {
      %c0_11 = arith.constant 0 : index
      %c0_12 = arith.constant 0 : index
      %13 = vector.load %arg4[%c0_11, %c0_12] : memref<32x32xf32, #tpu.memory_space<vmem>>, vector<32x32xf32>
      %c0_13 = arith.constant 0 : index
      %c0_14 = arith.constant 0 : index
      %14 = vector.load %arg7[%c0_13, %c0_14] : memref<128x128xf32, #tpu.memory_space<vmem>>, vector<128x128xf32>
      %15 = vector.shape_cast %14 : vector<128x128xf32> to vector<4x32x128xf32>
      %16 = vector.extract_strided_slice %15 {offsets = [0, 0, 0], sizes = [1, 32, 128], strides = [1, 1, 1]} : vector<4x32x128xf32> to vector<1x32x128xf32>
      %17 = vector.shape_cast %16 : vector<1x32x128xf32> to vector<32x128xf32>
      %18 = vector.extract_strided_slice %15 {offsets = [1, 0, 0], sizes = [1, 32, 128], strides = [1, 1, 1]} : vector<4x32x128xf32> to vector<1x32x128xf32>
      %19 = vector.shape_cast %18 : vector<1x32x128xf32> to vector<32x128xf32>
      %20 = vector.extract_strided_slice %15 {offsets = [2, 0, 0], sizes = [1, 32, 128], strides = [1, 1, 1]} : vector<4x32x128xf32> to vector<1x32x128xf32>
      %21 = vector.shape_cast %20 : vector<1x32x128xf32> to vector<32x128xf32>
      %22 = vector.extract_strided_slice %15 {offsets = [3, 0, 0], sizes = [1, 32, 128], strides = [1, 1, 1]} : vector<4x32x128xf32> to vector<1x32x128xf32>
      %23 = vector.shape_cast %22 : vector<1x32x128xf32> to vector<32x128xf32>
      %24 = tpu.concatenate %17, %19, %21, %23 in 1 : vector<32x128xf32>, vector<32x128xf32>, vector<32x128xf32>, vector<32x128xf32> -> vector<32x512xf32>
      %cst_15 = arith.constant dense<0.000000e+00> : vector<32x512xf32>
      %25 = tpu.matmul %13, %24, %cst_15 {dimension_numbers = #tpu.dot_dimension_numbers<[1], [0], [0], [1], [0, 0, 1, 1], [], []>} : vector<32x32xf32>, vector<32x512xf32>, vector<32x512xf32> -> vector<32x512xf32>
      %26 = vector.extract_strided_slice %25 {offsets = [0, 0], sizes = [32, 128], strides = [1, 1]} : vector<32x512xf32> to vector<32x128xf32>
      %c0_16 = arith.constant 0 : index
      %c0_17 = arith.constant 0 : index
      %c0_18 = arith.constant 0 : index
      %27 = vector.load %arg6[%c0_16, %c0_17, %c0_18] : memref<4x32x128xf32, #tpu.memory_space<vmem>>, vector<1x32x128xf32>
      %28 = vector.shape_cast %27 : vector<1x32x128xf32> to vector<32x128xf32>
      %29 = vector.shape_cast %26 : vector<32x128xf32> to vector<1x32x128xf32>
      tpu.vector_store %arg6[%c0_16, %c0_17, %c0_18], %29 {strides = array<i32>} : memref<4x32x128xf32, #tpu.memory_space<vmem>>, vector<1x32x128xf32>,
      %30 = vector.extract_strided_slice %25 {offsets = [0, 128], sizes = [32, 128], strides = [1, 1]} : vector<32x512xf32> to vector<32x128xf32>
      %c1 = arith.constant 1 : index
      %c0_19 = arith.constant 0 : index
      %c0_20 = arith.constant 0 : index
      %31 = vector.load %arg6[%c1, %c0_19, %c0_20] : memref<4x32x128xf32, #tpu.memory_space<vmem>>, vector<1x32x128xf32>
      %32 = vector.shape_cast %31 : vector<1x32x128xf32> to vector<32x128xf32>
      %33 = vector.shape_cast %30 : vector<32x128xf32> to vector<1x32x128xf32>
      tpu.vector_store %arg6[%c1, %c0_19, %c0_20], %33 {strides = array<i32>} : memref<4x32x128xf32, #tpu.memory_space<vmem>>, vector<1x32x128xf32>,
      %34 = vector.extract_strided_slice %25 {offsets = [0, 256], sizes = [32, 128], strides = [1, 1]} : vector<32x512xf32> to vector<32x128xf32>
      %c2 = arith.constant 2 : index
      %c0_21 = arith.constant 0 : index
      %c0_22 = arith.constant 0 : index
      %35 = vector.load %arg6[%c2, %c0_21, %c0_22] : memref<4x32x128xf32, #tpu.memory_space<vmem>>, vector<1x32x128xf32>
      %36 = vector.shape_cast %35 : vector<1x32x128xf32> to vector<32x128xf32>
      %37 = vector.shape_cast %34 : vector<32x128xf32> to vector<1x32x128xf32>
      tpu.vector_store %arg6[%c2, %c0_21, %c0_22], %37 {strides = array<i32>} : memref<4x32x128xf32, #tpu.memory_space<vmem>>, vector<1x32x128xf32>,
      %38 = vector.extract_strided_slice %25 {offsets = [0, 384], sizes = [32, 128], strides = [1, 1]} : vector<32x512xf32> to vector<32x128xf32>
      %c3 = arith.constant 3 : index
      %c0_23 = arith.constant 0 : index
      %c0_24 = arith.constant 0 : index
      %39 = vector.load %arg6[%c3, %c0_23, %c0_24] : memref<4x32x128xf32, #tpu.memory_space<vmem>>, vector<1x32x128xf32>
      %40 = vector.shape_cast %39 : vector<1x32x128xf32> to vector<32x128xf32>
      %41 = vector.shape_cast %38 : vector<32x128xf32> to vector<1x32x128xf32>
      tpu.vector_store %arg6[%c3, %c0_23, %c0_24], %41 {strides = array<i32>} : memref<4x32x128xf32, #tpu.memory_space<vmem>>, vector<1x32x128xf32>,
    } else {
    }
    return
  }
  func.func @transform_0(%arg0: i32, %arg1: i32, %arg2: i32) -> (i32, i32, i32) {
    %c0_i32 = arith.constant 0 : i32
    %c0_i32_0 = arith.constant 0 : i32
    return %arg0, %c0_i32, %arg2 : i32, i32, i32
  }
  func.func @transform_1(%arg0: i32, %arg1: i32, %arg2: i32) -> (i32, i32) {
    %c0_i32 = arith.constant 0 : i32
    %c0_i32_0 = arith.constant 0 : i32
    %c0_i32_1 = arith.constant 0 : i32
    return %c0_i32, %c0_i32_0 : i32, i32
  }
  func.func @transform_2(%arg0: i32, %arg1: i32, %arg2: i32) -> (i32, i32) {
    %c0_i32 = arith.constant 0 : i32
    return %arg2, %arg1 : i32, i32
  }
  func.func @transform_3(%arg0: i32, %arg1: i32, %arg2: i32) -> (i32, i32, i32) {
    %c0_i32 = arith.constant 0 : i32
    %c0_i32_0 = arith.constant 0 : i32
    return %arg0, %c0_i32, %arg1 : i32, i32, i32
  }
}

</mosaic_0001>

<llo_original>
// kernel: tpu_custom_call.1
$region0: #{tpu_custom_call.1}
  #allocation0 [shape = 'u32[]', space=smem, size = 0x4, offset = 0x4, fixed_abs, tag = 'smem constant byte address 0x4 - core index']
  #allocation1 [shape = 'u32[144,128]{1,0:T(1,128)}', space=vmem, size = 0x12000, scoped, tag = 'internal scratch']
  #allocation2 [shape = 'f32[128,128]{1,0:T(8,128)}', space=vmem, size = 0x10000, scoped, tag = 'scratch operand']
  %s0 = inlined_call_operand.hbm [shape: f32[4,32,128], index: 0, kind: input, shape index: {}]
  %s1 = inlined_call_operand.hbm [shape: f32[32,32], index: 1, kind: input, shape index: {}]
  %s2 = inlined_call_operand.hbm [shape: f32[128,128], index: 2, kind: input, shape index: {}]
  %s3 = inlined_call_operand.hbm [shape: f32[4,32,128], index: 3, kind: output, shape index: {}]
  %s4 = sld [smem:[#allocation0]]
  $region42: #{tpu_custom_call.1} parent=0
    _
  %s6 = ssub.s32 1, %s4
  %s7 = scalar_select 0, %s6, %s4
  $region1: #{tpu_custom_call.1} parent=0
    #allocation3 [shape = 'u8[65536]{0}', space=vmem, size = 0x10000, scoped, tag = 'input window, operand 0, single buffered']
    #allocation4 [shape = 's32[1]{0}', space=sflag, size = 0x4, scoped, tag = 'scoped memory for tpu_custom_call.1']
    #allocation5 [shape = 's32[1]{0}', space=sflag, size = 0x4, scoped, tag = 'scoped memory for tpu_custom_call.1']
    #allocation6 [shape = 'u8[16384]{0}', space=vmem, size = 0x4000, scoped, tag = 'input window, operand 1, single buffered']
    #allocation7 [shape = 's32[1]{0}', space=sflag, size = 0x4, scoped, tag = 'scoped memory for tpu_custom_call.1']
    #allocation8 [shape = 'u8[65536]{0}', space=vmem, size = 0x10000, scoped, tag = 'input window, operand 2, single buffered']
    #allocation9 [shape = 'u8[65536]{0}', space=vmem, size = 0x10000, scoped, tag = 'output window, operand 0, single buffered']
    %8 = vsyncpa [#allocation4], 0
    %9 = vsyncpa [#allocation7], 0
    %10 = vsyncpa [#allocation5], 0
    // Predicated region
    $region2: #{tpu_custom_call.1} parent=1 // pred_check
      _
    $region3: #{tpu_custom_call.1} parent=1 // pred_check_branch
      %12 = sbr.rel (0) target = $region5
    $region4: #{tpu_custom_call.1} parent=1 // pred_region
      %s14 = ssub.s32 2048, 2048
      %15 = vsyncadd [#allocation4], %s14
      %s16 = sshll.u32 [#allocation3], 4
      %s17 = int_to_ptr.vmem [resolvable:$true] %s16
      %22 = dma.hbm_to_vmem [thread:$0]  %s0, 2048, %s17, [#allocation4], 128, 128, 8
    $region5: #{tpu_custom_call.1} parent=1 // pred_fallthru
      _
    // Predicated region
    $region6: #{tpu_custom_call.1} parent=1 // pred_check
      _
    $region7: #{tpu_custom_call.1} parent=1 // pred_check_branch
      %24 = sbr.rel (0) target = $region9
    $region8: #{tpu_custom_call.1} parent=1 // pred_region
      %s26 = ssub.s32 512, 512
      %27 = vsyncadd [#allocation7], %s26
      %s28 = sshll.u32 [#allocation6], 4
      %s29 = int_to_ptr.vmem [resolvable:$true] %s28
      %34 = dma.hbm_to_vmem [thread:$0]  %s1, 512, %s29, [#allocation7], 128, 128, 8
    $region9: #{tpu_custom_call.1} parent=1 // pred_fallthru
      _
    // Predicated region
    $region10: #{tpu_custom_call.1} parent=1 // pred_check
      _
    $region11: #{tpu_custom_call.1} parent=1 // pred_check_branch
      %36 = sbr.rel (0) target = $region13
    $region12: #{tpu_custom_call.1} parent=1 // pred_region
      %s38 = ssub.s32 2048, 2048
      %39 = vsyncadd [#allocation7], %s38
      %s40 = sshll.u32 [#allocation8], 4
      %s41 = int_to_ptr.vmem [resolvable:$true] %s40
      %46 = dma.hbm_to_vmem [thread:$0]  %s2, 2048, %s41, [#allocation7], 128, 128, 8
    $region13: #{tpu_custom_call.1} parent=1 // pred_fallthru
      _
    // Predicated region
    $region14: #{tpu_custom_call.1} parent=1 // pred_check
      _
    $region15: #{tpu_custom_call.1} parent=1 // pred_check_branch
      %48 = sbr.rel (0) target = $region17
    $region16: #{tpu_custom_call.1} parent=1 // pred_region
      %49 = dma.done [#allocation4], 2048
    $region17: #{tpu_custom_call.1} parent=1 // pred_fallthru
      _
    // Predicated region
    $region18: #{tpu_custom_call.1} parent=1 // pred_check
      _
    $region19: #{tpu_custom_call.1} parent=1 // pred_check_branch
      %51 = sbr.rel (0) target = $region21
    $region20: #{tpu_custom_call.1} parent=1 // pred_region
      %52 = dma.done [#allocation7], 512
    $region21: #{tpu_custom_call.1} parent=1 // pred_fallthru
      _
    // Predicated region
    $region22: #{tpu_custom_call.1} parent=1 // pred_check
      _
    $region23: #{tpu_custom_call.1} parent=1 // pred_check_branch
      %54 = sbr.rel (0) target = $region25
    $region24: #{tpu_custom_call.1} parent=1 // pred_region
      %55 = dma.done [#allocation7], 2048
    $region25: #{tpu_custom_call.1} parent=1 // pred_fallthru
      _
    %p56 = scmp.eq.s32.totalorder 0, 0
    // Predicated region
    $region26: #{tpu_custom_call.1} parent=1 // pred_check
      %p57 = pneg %p56
    $region27: #{tpu_custom_call.1} parent=1 // pred_check_branch
      %59 = sbr.rel (%p57) target = $region29
    $region28: #{tpu_custom_call.1} parent=1 // pred_region
      %60 = vst [vmem:[#allocation2] sm:$0xff] 0.0
      %61 = vst [vmem:[#allocation2 + $0x8] sm:$0xff] 0.0
      %62 = vst [vmem:[#allocation2 + $0x10] sm:$0xff] 0.0
      %63 = vst [vmem:[#allocation2 + $0x18] sm:$0xff] 0.0
      %64 = vst [vmem:[#allocation2 + $0x20] sm:$0xff] 0.0
      %65 = vst [vmem:[#allocation2 + $0x28] sm:$0xff] 0.0
      %66 = vst [vmem:[#allocation2 + $0x30] sm:$0xff] 0.0
      %67 = vst [vmem:[#allocation2 + $0x38] sm:$0xff] 0.0
      %68 = vst [vmem:[#allocation2 + $0x40] sm:$0xff] 0.0
      %69 = vst [vmem:[#allocation2 + $0x48] sm:$0xff] 0.0
      %70 = vst [vmem:[#allocation2 + $0x50] sm:$0xff] 0.0
      %71 = vst [vmem:[#allocation2 + $0x58] sm:$0xff] 0.0
      %72 = vst [vmem:[#allocation2 + $0x60] sm:$0xff] 0.0
      %73 = vst [vmem:[#allocation2 + $0x68] sm:$0xff] 0.0
      %74 = vst [vmem:[#allocation2 + $0x70] sm:$0xff] 0.0
      %75 = vst [vmem:[#allocation2 + $0x78] sm:$0xff] 0.0
    $region29: #{tpu_custom_call.1} parent=1 // pred_fallthru
      _
    %v76 = vld [vmem:[#allocation3] sm:$0xff]
    %v77 = vld [vmem:[#allocation3 + $0x8] sm:$0xff]
    %v78 = vld [vmem:[#allocation3 + $0x10] sm:$0xff]
    %v79 = vld [vmem:[#allocation3 + $0x18] sm:$0xff]
    %v80 = vld [vmem:[#allocation3 + $0x20] sm:$0xff]
    %v81 = vld [vmem:[#allocation3 + $0x28] sm:$0xff]
    %v82 = vld [vmem:[#allocation3 + $0x30] sm:$0xff]
    %v83 = vld [vmem:[#allocation3 + $0x38] sm:$0xff]
    %v84 = vld [vmem:[#allocation3 + $0x40] sm:$0xff]
    %v85 = vld [vmem:[#allocation3 + $0x48] sm:$0xff]
    %v86 = vld [vmem:[#allocation3 + $0x50] sm:$0xff]
    %v87 = vld [vmem:[#allocation3 + $0x58] sm:$0xff]
    %v88 = vld [vmem:[#allocation3 + $0x60] sm:$0xff]
    %v89 = vld [vmem:[#allocation3 + $0x68] sm:$0xff]
    %v90 = vld [vmem:[#allocation3 + $0x70] sm:$0xff]
    %v91 = vld [vmem:[#allocation3 + $0x78] sm:$0xff]
    %v92 = vld [vmem:[#allocation2] sm:$0xff]
    %v93 = vld [vmem:[#allocation2 + $0x8] sm:$0xff]
    %v94 = vld [vmem:[#allocation2 + $0x10] sm:$0xff]
    %v95 = vld [vmem:[#allocation2 + $0x18] sm:$0xff]
    %v96 = vld [vmem:[#allocation2 + $0x20] sm:$0xff]
    %v97 = vld [vmem:[#allocation2 + $0x28] sm:$0xff]
    %v98 = vld [vmem:[#allocation2 + $0x30] sm:$0xff]
    %v99 = vld [vmem:[#allocation2 + $0x38] sm:$0xff]
    %v100 = vld [vmem:[#allocation2 + $0x40] sm:$0xff]
    %v101 = vld [vmem:[#allocation2 + $0x48] sm:$0xff]
    %v102 = vld [vmem:[#allocation2 + $0x50] sm:$0xff]
    %v103 = vld [vmem:[#allocation2 + $0x58] sm:$0xff]
    %v104 = vld [vmem:[#allocation2 + $0x60] sm:$0xff]
    %v105 = vld [vmem:[#allocation2 + $0x68] sm:$0xff]
    %v106 = vld [vmem:[#allocation2 + $0x70] sm:$0xff]
    %v107 = vld [vmem:[#allocation2 + $0x78] sm:$0xff]
    %v108 = vld [vmem:[#allocation8] sm:$0xff]
    %v109 = vld [vmem:[#allocation8 + $0x8] sm:$0xff]
    %v110 = vld [vmem:[#allocation8 + $0x10] sm:$0xff]
    %v111 = vld [vmem:[#allocation8 + $0x18] sm:$0xff]
    %v112 = vld [vmem:[#allocation8 + $0x20] sm:$0xff]
    %v113 = vld [vmem:[#allocation8 + $0x28] sm:$0xff]
    %v114 = vld [vmem:[#allocation8 + $0x30] sm:$0xff]
    %v115 = vld [vmem:[#allocation8 + $0x38] sm:$0xff]
    %v116 = vld [vmem:[#allocation8 + $0x40] sm:$0xff]
    %v117 = vld [vmem:[#allocation8 + $0x48] sm:$0xff]
    %v118 = vld [vmem:[#allocation8 + $0x50] sm:$0xff]
    %v119 = vld [vmem:[#allocation8 + $0x58] sm:$0xff]
    %v120 = vld [vmem:[#allocation8 + $0x60] sm:$0xff]
    %v121 = vld [vmem:[#allocation8 + $0x68] sm:$0xff]
    %v122 = vld [vmem:[#allocation8 + $0x70] sm:$0xff]
    %v123 = vld [vmem:[#allocation8 + $0x78] sm:$0xff]
    %124 = vmatprep.subr.mxu0 0.0
    %125 = vmatpush1.msra.mxu0 %v108
    %126 = vmatprep.subr.mxu0 0.0
    %127 = vmatpush1.msra.mxu0 %v109
    %128 = vmatprep.subr.mxu0 0.0
    %129 = vmatpush1.msra.mxu0 %v110
    %130 = vmatprep.subr.mxu0 0.0
    %131 = vmatpush1.msra.mxu0 %v111
    %132 = vmatprep.subr.mxu0 0.0
    %133 = vmatpush1.msra.mxu0 %v112
    %134 = vmatprep.subr.mxu0 0.0
    %135 = vmatpush1.msra.mxu0 %v113
    %136 = vmatprep.subr.mxu0 0.0
    %137 = vmatpush1.msra.mxu0 %v114
    %138 = vmatprep.subr.mxu0 0.0
    %139 = vmatpush1.msra.mxu0 %v115
    %140 = vmatprep.subr.mxu0 0.0
    %141 = vmatpush1.msra.mxu0 %v116
    %142 = vmatprep.subr.mxu0 0.0
    %143 = vmatpush1.msra.mxu0 %v117
    %144 = vmatprep.subr.mxu0 0.0
    %145 = vmatpush1.msra.mxu0 %v118
    %146 = vmatprep.subr.mxu0 0.0
    %147 = vmatpush1.msra.mxu0 %v119
    %148 = vmatprep.subr.mxu0 0.0
    %149 = vmatpush1.msra.mxu0 %v120
    %150 = vmatprep.subr.mxu0 0.0
    %151 = vmatpush1.msra.mxu0 %v121
    %152 = vmatprep.subr.mxu0 0.0
    %153 = vmatpush1.msra.mxu0 %v122
    %154 = vmatprep.subr.mxu0 0.0
    %155 = vmatpush1.msra.mxu0 %v123
    %156 = vmatprep.subr.mxu0 0.0
    %157 = vmatpush1.msra.mxu0 0.0
    %158 = vmatprep.subr.mxu0 0.0
    %159 = vmatpush1.msra.mxu0 0.0
    %160 = vmatprep.subr.mxu0 0.0
    %161 = vmatpush1.msra.mxu0 0.0
    %162 = vmatprep.subr.mxu0 0.0
    %163 = vmatpush1.msra.mxu0 0.0
    %164 = vmatprep.subr.mxu0 0.0
    %165 = vmatpush1.msra.mxu0 0.0
    %166 = vmatprep.subr.mxu0 0.0
    %167 = vmatpush1.msra.mxu0 0.0
    %168 = vmatprep.subr.mxu0 0.0
    %169 = vmatpush1.msra.mxu0 0.0
    %170 = vmatprep.subr.mxu0 0.0
    %171 = vmatpush1.msra.mxu0 0.0
    %172 = vmatprep.subr.mxu0 0.0
    %173 = vmatpush1.msra.mxu0 0.0
    %174 = vmatprep.subr.mxu0 0.0
    %175 = vmatpush1.msra.mxu0 0.0
    %176 = vmatprep.subr.mxu0 0.0
    %177 = vmatpush1.msra.mxu0 0.0
    %178 = vmatprep.subr.mxu0 0.0
    %179 = vmatpush1.msra.mxu0 0.0
    %180 = vmatprep.subr.mxu0 0.0
    %181 = vmatpush1.msra.mxu0 0.0
    %182 = vmatprep.subr.mxu0 0.0
    %183 = vmatpush1.msra.mxu0 0.0
    %184 = vmatprep.subr.mxu0 0.0
    %185 = vmatpush1.msra.mxu0 0.0
    %186 = vmatprep.subr.mxu0 0.0
    %187 = vmatpush1.msra.mxu0 0.0
    %188 = vmatprep.mubr.f32.mxu0 0.0
    %189 = vmatmul.mubr.f32.gmra.mrb[0].mxu0 %v76
    %v190 = vpop.f32.mrb[0].mxu0
    %v191 = vadd.f32 0.0, %v190
    %v192 = vpop.f32.mrb[0].mxu0
    %193 = vmatprep.mubr.f32.mxu0 0.0
    %194 = vmatmul.mubr.f32.gmra.mrb[0].mxu0 %v77
    %v195 = vpop.f32.mrb[0].mxu0
    %v196 = vadd.f32 0.0, %v195
    %v197 = vpop.f32.mrb[0].mxu0
    %198 = vmatprep.mubr.f32.mxu0 0.0
    %199 = vmatmul.mubr.f32.gmra.mrb[0].mxu0 %v78
    %v200 = vpop.f32.mrb[0].mxu0
    %v201 = vadd.f32 0.0, %v200
    %v202 = vpop.f32.mrb[0].mxu0
    %203 = vmatprep.mubr.f32.mxu0 0.0
    %204 = vmatmul.mubr.f32.gmra.mrb[0].mxu0 %v79
    %v205 = vpop.f32.mrb[0].mxu0
    %v206 = vadd.f32 0.0, %v205
    %v207 = vpop.f32.mrb[0].mxu0
    %208 = vmatprep.mubr.f32.mxu0 0.0
    %209 = vmatmul.mubr.f32.gmra.mrb[0].mxu0 %v80
    %v210 = vpop.f32.mrb[0].mxu0
    %v211 = vadd.f32 0.0, %v210
    %v212 = vpop.f32.mrb[0].mxu0
    %213 = vmatprep.mubr.f32.mxu0 0.0
    %214 = vmatmul.mubr.f32.gmra.mrb[0].mxu0 %v81
    %v215 = vpop.f32.mrb[0].mxu0
    %v216 = vadd.f32 0.0, %v215
    %v217 = vpop.f32.mrb[0].mxu0
    %218 = vmatprep.mubr.f32.mxu0 0.0
    %219 = vmatmul.mubr.f32.gmra.mrb[0].mxu0 %v82
    %v220 = vpop.f32.mrb[0].mxu0
    %v221 = vadd.f32 0.0, %v220
    %v222 = vpop.f32.mrb[0].mxu0
    %223 = vmatprep.mubr.f32.mxu0 0.0
    %224 = vmatmul.mubr.f32.gmra.mrb[0].mxu0 %v83
    %v225 = vpop.f32.mrb[0].mxu0
    %v226 = vadd.f32 0.0, %v225
    %v227 = vpop.f32.mrb[0].mxu0
    %228 = vmatprep.mubr.f32.mxu0 0.0
    %229 = vmatmul.mubr.f32.gmra.mrb[0].mxu0 %v84
    %v230 = vpop.f32.mrb[0].mxu0
    %v231 = vadd.f32 0.0, %v230
    %v232 = vpop.f32.mrb[0].mxu0
    %233 = vmatprep.mubr.f32.mxu0 0.0
    %234 = vmatmul.mubr.f32.gmra.mrb[0].mxu0 %v85
    %v235 = vpop.f32.mrb[0].mxu0
    %v236 = vadd.f32 0.0, %v235
    %v237 = vpop.f32.mrb[0].mxu0
    %238 = vmatprep.mubr.f32.mxu0 0.0
    %239 = vmatmul.mubr.f32.gmra.mrb[0].mxu0 %v86
    %v240 = vpop.f32.mrb[0].mxu0
    %v241 = vadd.f32 0.0, %v240
    %v242 = vpop.f32.mrb[0].mxu0
    %243 = vmatprep.mubr.f32.mxu0 0.0
    %244 = vmatmul.mubr.f32.gmra.mrb[0].mxu0 %v87
    %v245 = vpop.f32.mrb[0].mxu0
    %v246 = vadd.f32 0.0, %v245
    %v247 = vpop.f32.mrb[0].mxu0
    %248 = vmatprep.mubr.f32.mxu0 0.0
    %249 = vmatmul.mubr.f32.gmra.mrb[0].mxu0 %v88
    %v250 = vpop.f32.mrb[0].mxu0
    %v251 = vadd.f32 0.0, %v250
    %v252 = vpop.f32.mrb[0].mxu0
    %253 = vmatprep.mubr.f32.mxu0 0.0
    %254 = vmatmul.mubr.f32.gmra.mrb[0].mxu0 %v89
    %v255 = vpop.f32.mrb[0].mxu0
    %v256 = vadd.f32 0.0, %v255
    %v257 = vpop.f32.mrb[0].mxu0
    %258 = vmatprep.mubr.f32.mxu0 0.0
    %259 = vmatmul.mubr.f32.gmra.mrb[0].mxu0 %v90
    %v260 = vpop.f32.mrb[0].mxu0
    %v261 = vadd.f32 0.0, %v260
    %v262 = vpop.f32.mrb[0].mxu0
    %263 = vmatprep.mubr.f32.mxu0 0.0
    %264 = vmatmul.mubr.f32.gmra.mrb[0].mxu0 %v91
    %v265 = vpop.f32.mrb[0].mxu0
    %v266 = vadd.f32 0.0, %v265
    %v267 = vpop.f32.mrb[0].mxu0
    %268 = vdwg.mxu0
    %v269 = vadd.f32 %v92, %v191
    %v270 = vadd.f32 %v93, %v196
    %v271 = vadd.f32 %v94, %v201
    %v272 = vadd.f32 %v95, %v206
    %v273 = vadd.f32 %v96, %v211
    %v274 = vadd.f32 %v97, %v216
    %v275 = vadd.f32 %v98, %v221
    %v276 = vadd.f32 %v99, %v226
    %v277 = vadd.f32 %v100, %v231
    %v278 = vadd.f32 %v101, %v236
    %v279 = vadd.f32 %v102, %v241
    %v280 = vadd.f32 %v103, %v246
    %v281 = vadd.f32 %v104, %v251
    %v282 = vadd.f32 %v105, %v256
    %v283 = vadd.f32 %v106, %v261
    %v284 = vadd.f32 %v107, %v266
    %285 = vst [vmem:[#allocation2] sm:$0xff] %v269
    %286 = vst [vmem:[#allocation2 + $0x8] sm:$0xff] %v270
    %287 = vst [vmem:[#allocation2 + $0x10] sm:$0xff] %v271
    %288 = vst [vmem:[#allocation2 + $0x18] sm:$0xff] %v272
    %289 = vst [vmem:[#allocation2 + $0x20] sm:$0xff] %v273
    %290 = vst [vmem:[#allocation2 + $0x28] sm:$0xff] %v274
    %291 = vst [vmem:[#allocation2 + $0x30] sm:$0xff] %v275
    %292 = vst [vmem:[#allocation2 + $0x38] sm:$0xff] %v276
    %293 = vst [vmem:[#allocation2 + $0x40] sm:$0xff] %v277
    %294 = vst [vmem:[#allocation2 + $0x48] sm:$0xff] %v278
    %295 = vst [vmem:[#allocation2 + $0x50] sm:$0xff] %v279
    %296 = vst [vmem:[#allocation2 + $0x58] sm:$0xff] %v280
    %297 = vst [vmem:[#allocation2 + $0x60] sm:$0xff] %v281
    %298 = vst [vmem:[#allocation2 + $0x68] sm:$0xff] %v282
    %299 = vst [vmem:[#allocation2 + $0x70] sm:$0xff] %v283
    %300 = vst [vmem:[#allocation2 + $0x78] sm:$0xff] %v284
    // Predicated region
    $region30: #{tpu_custom_call.1} parent=1 // pred_check
      %p301 = pneg %p56
    $region31: #{tpu_custom_call.1} parent=1 // pred_check_branch
      %303 = sbr.rel (%p301) target = $region33
    $region32: #{tpu_custom_call.1} parent=1 // pred_region
      %v304 = vld [vmem:[#allocation6] sm:$0xff]
      %v305 = vld [vmem:[#allocation6 + $0x8] sm:$0xff]
      %v306 = vld [vmem:[#allocation6 + $0x10] sm:$0xff]
      %v307 = vld [vmem:[#allocation6 + $0x18] sm:$0xff]
      %v308 = vld [vmem:[#allocation2] sm:$0xff]
      %v309 = vld [vmem:[#allocation2 + $0x8] sm:$0xff]
      %v310 = vld [vmem:[#allocation2 + $0x10] sm:$0xff]
      %v311 = vld [vmem:[#allocation2 + $0x18] sm:$0xff]
      %v312 = vld [vmem:[#allocation2 + $0x20] sm:$0xff]
      %v313 = vld [vmem:[#allocation2 + $0x28] sm:$0xff]
      %v314 = vld [vmem:[#allocation2 + $0x30] sm:$0xff]
      %v315 = vld [vmem:[#allocation2 + $0x38] sm:$0xff]
      %v316 = vld [vmem:[#allocation2 + $0x40] sm:$0xff]
      %v317 = vld [vmem:[#allocation2 + $0x48] sm:$0xff]
      %v318 = vld [vmem:[#allocation2 + $0x50] sm:$0xff]
      %v319 = vld [vmem:[#allocation2 + $0x58] sm:$0xff]
      %v320 = vld [vmem:[#allocation2 + $0x60] sm:$0xff]
      %v321 = vld [vmem:[#allocation2 + $0x68] sm:$0xff]
      %v322 = vld [vmem:[#allocation2 + $0x70] sm:$0xff]
      %v323 = vld [vmem:[#allocation2 + $0x78] sm:$0xff]
      %vm324 = vcmask 261120
      %v326 = vsel %vm324, %v304, 0
      %v329 = vsel %vm324, %v305, 0
      %v332 = vsel %vm324, %v306, 0
      %v335 = vsel %vm324, %v307, 0
      %337 = vmatprep.subr.mxu0 %v312
      %338 = vmatpush1.msra.mxu0 %v308
      %339 = vmatprep.subr.mxu0 %v313
      %340 = vmatpush1.msra.mxu0 %v309
      %341 = vmatprep.subr.mxu0 %v314
      %342 = vmatpush1.msra.mxu0 %v310
      %343 = vmatprep.subr.mxu0 %v315
      %344 = vmatpush1.msra.mxu0 %v311
      %345 = vmatprep.subr.mxu0 0.0
      %346 = vmatpush1.msra.mxu0 0.0
      %347 = vmatprep.subr.mxu0 0.0
      %348 = vmatpush1.msra.mxu0 0.0
      %349 = vmatprep.subr.mxu0 0.0
      %350 = vmatpush1.msra.mxu0 0.0
      %351 = vmatprep.subr.mxu0 0.0
      %352 = vmatpush1.msra.mxu0 0.0
      %353 = vmatprep.subr.mxu0 0.0
      %354 = vmatpush1.msra.mxu0 0.0
      %355 = vmatprep.subr.mxu0 0.0
      %356 = vmatpush1.msra.mxu0 0.0
      %357 = vmatprep.subr.mxu0 0.0
      %358 = vmatpush1.msra.mxu0 0.0
      %359 = vmatprep.subr.mxu0 0.0
      %360 = vmatpush1.msra.mxu0 0.0
      %361 = vmatprep.subr.mxu0 0.0
      %362 = vmatpush1.msra.mxu0 0.0
      %363 = vmatprep.subr.mxu0 0.0
      %364 = vmatpush1.msra.mxu0 0.0
      %365 = vmatprep.subr.mxu0 0.0
      %366 = vmatpush1.msra.mxu0 0.0
      %367 = vmatprep.subr.mxu0 0.0
      %368 = vmatpush1.msra.mxu0 0.0
      %369 = vmatprep.subr.mxu0 0.0
      %370 = vmatpush1.msra.mxu0 0.0
      %371 = vmatprep.subr.mxu0 0.0
      %372 = vmatpush1.msra.mxu0 0.0
      %373 = vmatprep.subr.mxu0 0.0
      %374 = vmatpush1.msra.mxu0 0.0
      %375 = vmatprep.subr.mxu0 0.0
      %376 = vmatpush1.msra.mxu0 0.0
      %377 = vmatprep.subr.mxu0 0.0
      %378 = vmatpush1.msra.mxu0 0.0
      %379 = vmatprep.subr.mxu0 0.0
      %380 = vmatpush1.msra.mxu0 0.0
      %381 = vmatprep.subr.mxu0 0.0
      %382 = vmatpush1.msra.mxu0 0.0
      %383 = vmatprep.subr.mxu0 0.0
      %384 = vmatpush1.msra.mxu0 0.0
      %385 = vmatprep.subr.mxu0 0.0
      %386 = vmatpush1.msra.mxu0 0.0
      %387 = vmatprep.subr.mxu0 0.0
      %388 = vmatpush1.msra.mxu0 0.0
      %389 = vmatprep.subr.mxu0 0.0
      %390 = vmatpush1.msra.mxu0 0.0
      %391 = vmatprep.subr.mxu0 0.0
      %392 = vmatpush1.msra.mxu0 0.0
      %393 = vmatprep.subr.mxu0 0.0
      %394 = vmatpush1.msra.mxu0 0.0
      %395 = vmatprep.subr.mxu0 0.0
      %396 = vmatpush1.msra.mxu0 0.0
      %397 = vmatprep.subr.mxu0 0.0
      %398 = vmatpush1.msra.mxu0 0.0
      %399 = vmatprep.subr.mxu0 0.0
      %400 = vmatpush1.msra.mxu0 0.0
      %401 = vmatprep.mubr.f32.mxu0 0.0
      %402 = vmatmul.mubr.f32.gmra.mrb[0].mxu0 %v326
      %v403 = vpop.f32.mrb[0].mxu0
      %v404 = vadd.f32 0.0, %v403
      %v405 = vpop.f32.mrb[0].mxu0
      %v406 = vadd.f32 0.0, %v405
      %407 = vmatprep.mubr.f32.mxu0 0.0
      %408 = vmatmul.mubr.f32.gmra.mrb[0].mxu0 %v329
      %v409 = vpop.f32.mrb[0].mxu0
      %v410 = vadd.f32 0.0, %v409
      %v411 = vpop.f32.mrb[0].mxu0
      %v412 = vadd.f32 0.0, %v411
      %413 = vmatprep.mubr.f32.mxu0 0.0
      %414 = vmatmul.mubr.f32.gmra.mrb[0].mxu0 %v332
      %v415 = vpop.f32.mrb[0].mxu0
      %v416 = vadd.f32 0.0, %v415
      %v417 = vpop.f32.mrb[0].mxu0
      %v418 = vadd.f32 0.0, %v417
      %419 = vmatprep.mubr.f32.mxu0 0.0
      %420 = vmatmul.mubr.f32.gmra.mrb[0].mxu0 %v335
      %v421 = vpop.f32.mrb[0].mxu0
      %v422 = vadd.f32 0.0, %v421
      %v423 = vpop.f32.mrb[0].mxu0
      %v424 = vadd.f32 0.0, %v423
      %425 = vdwg.mxu0
      %426 = vmatprep.subr.mxu0 %v320
      %427 = vmatpush1.msra.mxu0 %v316
      %428 = vmatprep.subr.mxu0 %v321
      %429 = vmatpush1.msra.mxu0 %v317
      %430 = vmatprep.subr.mxu0 %v322
      %431 = vmatpush1.msra.mxu0 %v318
      %432 = vmatprep.subr.mxu0 %v323
      %433 = vmatpush1.msra.mxu0 %v319
      %434 = vmatprep.subr.mxu0 0.0
      %435 = vmatpush1.msra.mxu0 0.0
      %436 = vmatprep.subr.mxu0 0.0
      %437 = vmatpush1.msra.mxu0 0.0
      %438 = vmatprep.subr.mxu0 0.0
      %439 = vmatpush1.msra.mxu0 0.0
      %440 = vmatprep.subr.mxu0 0.0
      %441 = vmatpush1.msra.mxu0 0.0
      %442 = vmatprep.subr.mxu0 0.0
      %443 = vmatpush1.msra.mxu0 0.0
      %444 = vmatprep.subr.mxu0 0.0
      %445 = vmatpush1.msra.mxu0 0.0
      %446 = vmatprep.subr.mxu0 0.0
      %447 = vmatpush1.msra.mxu0 0.0
      %448 = vmatprep.subr.mxu0 0.0
      %449 = vmatpush1.msra.mxu0 0.0
      %450 = vmatprep.subr.mxu0 0.0
      %451 = vmatpush1.msra.mxu0 0.0
      %452 = vmatprep.subr.mxu0 0.0
      %453 = vmatpush1.msra.mxu0 0.0
      %454 = vmatprep.subr.mxu0 0.0
      %455 = vmatpush1.msra.mxu0 0.0
      %456 = vmatprep.subr.mxu0 0.0
      %457 = vmatpush1.msra.mxu0 0.0
      %458 = vmatprep.subr.mxu0 0.0
      %459 = vmatpush1.msra.mxu0 0.0
      %460 = vmatprep.subr.mxu0 0.0
      %461 = vmatpush1.msra.mxu0 0.0
      %462 = vmatprep.subr.mxu0 0.0
      %463 = vmatpush1.msra.mxu0 0.0
      %464 = vmatprep.subr.mxu0 0.0
      %465 = vmatpush1.msra.mxu0 0.0
      %466 = vmatprep.subr.mxu0 0.0
      %467 = vmatpush1.msra.mxu0 0.0
      %468 = vmatprep.subr.mxu0 0.0
      %469 = vmatpush1.msra.mxu0 0.0
      %470 = vmatprep.subr.mxu0 0.0
      %471 = vmatpush1.msra.mxu0 0.0
      %472 = vmatprep.subr.mxu0 0.0
      %473 = vmatpush1.msra.mxu0 0.0
      %474 = vmatprep.subr.mxu0 0.0
      %475 = vmatpush1.msra.mxu0 0.0
      %476 = vmatprep.subr.mxu0 0.0
      %477 = vmatpush1.msra.mxu0 0.0
      %478 = vmatprep.subr.mxu0 0.0
      %479 = vmatpush1.msra.mxu0 0.0
      %480 = vmatprep.subr.mxu0 0.0
      %481 = vmatpush1.msra.mxu0 0.0
      %482 = vmatprep.subr.mxu0 0.0
      %483 = vmatpush1.msra.mxu0 0.0
      %484 = vmatprep.subr.mxu0 0.0
      %485 = vmatpush1.msra.mxu0 0.0
      %486 = vmatprep.subr.mxu0 0.0
      %487 = vmatpush1.msra.mxu0 0.0
      %488 = vmatprep.subr.mxu0 0.0
      %489 = vmatpush1.msra.mxu0 0.0
      %490 = vmatprep.mubr.f32.mxu0 0.0
      %491 = vmatmul.mubr.f32.gmra.mrb[0].mxu0 %v326
      %v492 = vpop.f32.mrb[0].mxu0
      %v493 = vadd.f32 0.0, %v492
      %v494 = vpop.f32.mrb[0].mxu0
      %v495 = vadd.f32 0.0, %v494
      %496 = vmatprep.mubr.f32.mxu0 0.0
      %497 = vmatmul.mubr.f32.gmra.mrb[0].mxu0 %v329
      %v498 = vpop.f32.mrb[0].mxu0
      %v499 = vadd.f32 0.0, %v498
      %v500 = vpop.f32.mrb[0].mxu0
      %v501 = vadd.f32 0.0, %v500
      %502 = vmatprep.mubr.f32.mxu0 0.0
      %503 = vmatmul.mubr.f32.gmra.mrb[0].mxu0 %v332
      %v504 = vpop.f32.mrb[0].mxu0
      %v505 = vadd.f32 0.0, %v504
      %v506 = vpop.f32.mrb[0].mxu0
      %v507 = vadd.f32 0.0, %v506
      %508 = vmatprep.mubr.f32.mxu0 0.0
      %509 = vmatmul.mubr.f32.gmra.mrb[0].mxu0 %v335
      %v510 = vpop.f32.mrb[0].mxu0
      %v511 = vadd.f32 0.0, %v510
      %v512 = vpop.f32.mrb[0].mxu0
      %v513 = vadd.f32 0.0, %v512
      %514 = vdwg.mxu0
      %515 = vst [vmem:[#allocation9] sm:$0xff] %v404
      %516 = vst [vmem:[#allocation9 + $0x8] sm:$0xff] %v410
      %517 = vst [vmem:[#allocation9 + $0x10] sm:$0xff] %v416
      %518 = vst [vmem:[#allocation9 + $0x18] sm:$0xff] %v422
      %s519 = scalar_lea.vmem [#allocation9], 32
      %520 = vst [vmem:[%s519] sm:$0xff] %v406
      %521 = vst [vmem:[%s519 + $0x8] sm:$0xff] %v412
      %522 = vst [vmem:[%s519 + $0x10] sm:$0xff] %v418
      %523 = vst [vmem:[%s519 + $0x18] sm:$0xff] %v424
      %s524 = scalar_lea.vmem [#allocation9], 64
      %525 = vst [vmem:[%s524] sm:$0xff] %v493
      %526 = vst [vmem:[%s524 + $0x8] sm:$0xff] %v499
      %527 = vst [vmem:[%s524 + $0x10] sm:$0xff] %v505
      %528 = vst [vmem:[%s524 + $0x18] sm:$0xff] %v511
      %s529 = scalar_lea.vmem [#allocation9], 96
      %530 = vst [vmem:[%s529] sm:$0xff] %v495
      %531 = vst [vmem:[%s529 + $0x8] sm:$0xff] %v501
      %532 = vst [vmem:[%s529 + $0x10] sm:$0xff] %v507
      %533 = vst [vmem:[%s529 + $0x18] sm:$0xff] %v513
    $region33: #{tpu_custom_call.1} parent=1 // pred_fallthru
      _
    // Predicated region
    $region34: #{tpu_custom_call.1} parent=1 // pred_check
      _
    $region35: #{tpu_custom_call.1} parent=1 // pred_check_branch
      %535 = sbr.rel (0) target = $region37
    $region36: #{tpu_custom_call.1} parent=1 // pred_region
      %s537 = ssub.s32 2048, 2048
      %538 = vsyncadd [#allocation5], %s537
      %s539 = sshll.u32 [#allocation9], 4
      %s540 = int_to_ptr.vmem [resolvable:$true] %s539
      %545 = dma.vmem_to_hbm [thread:$0]  %s540, 2048, %s3, [#allocation5], 128, 128, 8
    $region37: #{tpu_custom_call.1} parent=1 // pred_fallthru
      _
    // Predicated region
    $region38: #{tpu_custom_call.1} parent=1 // pred_check
      _
    $region39: #{tpu_custom_call.1} parent=1 // pred_check_branch
      %547 = sbr.rel (0) target = $region41
    $region40: #{tpu_custom_call.1} parent=1 // pred_region
      %548 = dma.done [#allocation5], 2048
    $region41: #{tpu_custom_call.1} parent=1 // pred_fallthru
      _
    %549 = vsyncpa [#allocation4], 1
    %550 = vsyncpa [#allocation7], 1
    %551 = vsyncpa [#allocation5], 1

</llo_original>
